<compile_context>
chip_gen: v7x
topology: tpu7x:2x2x1
jax: 0.10.0
libtpu: 0.0.40
codegen_flags: <defaults>
</compile_context>

<pallas_src>
import functools

import jax
import jax.numpy as jnp
from jax import lax
from jax.experimental import pallas as pl
from jax.experimental.pallas import tpu as pltpu


def _round_up(x, m):
    return (x + m - 1) // m * m


# ---------------------------------------------------------------------------
# Kernel
# ---------------------------------------------------------------------------
def _layer_kernel(x_ref, w1_ref, w2_ref, w3_ref, b1_ref, b2_ref, b3_ref, o_ref,
                  *, tl, l_out, im2col_in_kernel):
    """One (batch, length-tile) step of conv/BN/ReLU x3.

    x_ref : stride==1: (1, 1, C_pad,   tl+12) bf16  raw input window (+-6 halo)
            stride>1 : (1, 1, 3*C_pad, tl+10) bf16  wrapper im2col (stride folded in)
    w1_ref: (O_pad, 3*C_pad) bf16  -- BN1-scale folded, tap-major columns
    w2_ref: (O_pad, 5*O_pad) bf16  -- BN2-scale folded
    w3_ref: (O_pad, 7*O_pad) bf16  -- BN3-scale folded
    b*_ref: (O_pad, 1) f32         -- folded BN biases
    o_ref : (1, O_pad, tl) out_dtype
    """
    j = pl.program_id(1)
    t0 = j * tl                               # global output position of local lane 0

    # Validity masks for the recomputed halo: h1/h2 positions outside [0, l_out) must be
    # exactly zero so the next conv sees the same zero padding as nn.Conv1d.
    pos1 = t0 - 5 + lax.broadcasted_iota(jnp.int32, (1, tl + 10), 1)
    m1 = jnp.logical_and(pos1 >= 0, pos1 < l_out)
    pos2 = t0 - 3 + lax.broadcasted_iota(jnp.int32, (1, tl + 6), 1)
    m2 = jnp.logical_and(pos2 >= 0, pos2 < l_out)

    # ---- conv1 (k=3) ----
    if im2col_in_kernel:              # stride == 1: build the 3-tap RHS in-kernel
        xw = x_ref[0, 0]                                              # (C_pad, tl+12)
        rhs1 = jnp.concatenate([xw[:, k:k + tl + 10] for k in range(3)], axis=0)
    else:                             # stride > 1: taps/stride folded in wrapper gather
        rhs1 = x_ref[0, 0]                                            # (3*C_pad, tl+10)
    h1 = jnp.dot(w1_ref[...], rhs1, preferred_element_type=jnp.float32)
    h1 = jnp.where(m1, jnp.maximum(h1 + b1_ref[...], 0.0), 0.0)
    h1 = h1.astype(jnp.bfloat16)      # cast once, BEFORE the 5x tap concat

    # ---- conv2 (k=5): taps fused into one MXU contraction ----
    rhs2 = jnp.concatenate([h1[:, k:k + tl + 6] for k in range(5)], axis=0)
    h2 = jnp.dot(w2_ref[...], rhs2, preferred_element_type=jnp.float32)
    h2 = jnp.where(m2, jnp.maximum(h2 + b2_ref[...], 0.0), 0.0)
    h2 = h2.astype(jnp.bfloat16)      # cast once, BEFORE the 7x tap concat

    # ---- conv3 (k=7) + final BN (no ReLU) ----
    rhs3 = jnp.concatenate([h2[:, k:k + tl] for k in range(7)], axis=0)
    out = jnp.dot(w3_ref[...], rhs3, preferred_element_type=jnp.float32)
    o_ref[0] = (out + b3_ref[...]).astype(o_ref.dtype)


# ---------------------------------------------------------------------------
# Parameter prep
# ---------------------------------------------------------------------------
def _fold_bn(params):
    """Fold eval-mode BN scale into the conv weights (f32), then cast to bf16."""
    w1, w2, w3, s1, b1, s2, b2, s3, b3 = params
    fold = lambda w, s: (w * s[:, 0][:, None, None]).astype(jnp.bfloat16)
    return fold(w1, s1), fold(w2, s2), fold(w3, s3), b1, b2, b3


# ---------------------------------------------------------------------------
# Wrapper
# ---------------------------------------------------------------------------
def layer_forward(x, params, *, stride=1, tl=None, out_dtype=jnp.float32):
    """x: (N, in_ch, L) f32.  Returns (N, out_ch, L_out) out_dtype (eval-mode BatchNorm)."""
    w1 = params[0]
    n, c_in, length = x.shape
    o_ch = w1.shape[0]
    l_out = (length + 2 - 3) // stride + 1

    if tl is None:
        # v7x-safe default (64 MiB VMEM).  On v5e/v6e (128 MiB) raise to 1024-2048
        # for long sequences to amortize per-step overhead and the halo recompute.
        tl = max(128, min(512, _round_up(l_out, 128)))
    assert tl % 128 == 0, "length tile must be a multiple of 128 (lane-dense stores)"

    # ---- alignment / padding (16 keeps bf16 sublane packing dense; bump to 128/256
    # for large channel counts to fill the 256-wide v6e/v7x MXU) ----
    c_pad = _round_up(c_in, 16)
    o_pad = _round_up(o_ch, 16)
    l_out_pad = _round_up(l_out, tl)
    num_l = l_out_pad // tl

    # ---- BN-scale folded, tap-major flattened weights (bf16) + f32 biases ----
    w1f, w2f, w3f, b1f, b2f, b3f = _fold_bn(params)

    def relayout(w, cin_pad):
        o, c, k = w.shape
        wp = jnp.pad(w, ((0, o_pad - o), (0, cin_pad - c), (0, 0)))
        return jnp.transpose(wp, (0, 2, 1)).reshape(o_pad, k * cin_pad)

    w1k = relayout(w1f, c_pad)                 # (O_pad, 3*C_pad)
    w2k = relayout(w2f, o_pad)                 # (O_pad, 5*O_pad)
    w3k = relayout(w3f, o_pad)                 # (O_pad, 7*O_pad)
    padb = lambda b: jnp.pad(b, ((0, o_pad - o_ch), (0, 0))).astype(jnp.float32)
    b1p, b2p, b3p = padb(b1f), padb(b2f), padb(b3f)

    # ---- conv1 input prep ----
    if stride == 1:
        # Raw overlapping (C_pad, tl+12) windows (+-6 halo); conv1 taps built in-kernel.
        lp = 6
        x_pad = jnp.pad(x, ((0, 0), (0, c_pad - c_in),
                            (lp, l_out_pad + 12 - lp - length)))
        idx = jnp.arange(num_l)[:, None] * tl + jnp.arange(tl + 12)[None, :]
        xg = jnp.transpose(x_pad[:, :, idx], (0, 2, 1, 3)).astype(jnp.bfloat16)
        x_rows, x_cols = c_pad, tl + 12        # (n, num_l, c_pad, tl+12)
        im2col_in_kernel = True
    else:
        # Stride folded into a wrapper-side im2col gather (3 taps, stride-decimated).
        lp = 5 * stride + 1
        total_len = (l_out_pad + 9) * stride + 3
        x_pad = jnp.pad(x, ((0, 0), (0, c_pad - c_in), (lp, total_len - lp - length)))
        base = (jnp.arange(num_l) * (tl * stride))[:, None] \
            + (jnp.arange(tl + 10) * stride)[None, :]
        idx = jnp.arange(3)[:, None, None] + base[None]           # (3, num_l, tl+10)
        xg = x_pad[:, :, idx]                                     # (n, c_pad, 3, num_l, T)
        xg = jnp.transpose(xg, (0, 3, 2, 1, 4))                   # (n, num_l, 3, c_pad, T)
        xg = xg.reshape(n, num_l, 3 * c_pad, tl + 10).astype(jnp.bfloat16)
        x_rows, x_cols = 3 * c_pad, tl + 10
        im2col_in_kernel = False

    kernel = functools.partial(_layer_kernel, tl=tl, l_out=l_out,
                               im2col_in_kernel=im2col_in_kernel)

    full = lambda a: pl.BlockSpec(a.shape, lambda i, j: (0,) * a.ndim)
    grid_spec = pltpu.PrefetchScalarGridSpec(
        num_scalar_prefetch=0,
        grid=(n, num_l),                       # batch folded into the grid (no body loop)
        in_specs=[
            pl.BlockSpec((1, 1, x_rows, x_cols), lambda i, j: (i, j, 0, 0)),
            full(w1k), full(w2k), full(w3k),
            full(b1p), full(b2p), full(b3p),
        ],
        out_specs=pl.BlockSpec((1, o_pad, tl), lambda i, j: (i, 0, j)),
    )

    # ---- accurate VMEM budget: weights (x2), double-buffered x/out blocks, and the
    # per-step temporaries (rhs1/h1/rhs2/h2/rhs3/out), with a 2x safety factor.  Cap at
    # 48 MiB so defaults stay safe on v7x's 64 MiB VMEM; larger caller-chosen tiles
    # (v5e/v6e, 128 MiB) fall back to a bigger cap. ----
    out_bytes = jnp.dtype(out_dtype).itemsize
    w_bytes = (w1k.size + w2k.size + w3k.size) * 2 + (b1p.size + b2p.size + b3p.size) * 4
    x_blk = x_rows * x_cols * 2
    o_blk = o_pad * tl * out_bytes
    tmp_bytes = (3 * c_pad * (tl + 10) * 2          # rhs1
                 + o_pad * (tl + 10) * (4 + 2)      # h1 f32 + bf16
                 + 5 * o_pad * (tl + 6) * 2         # rhs2
                 + o_pad * (tl + 6) * (4 + 2)       # h2 f32 + bf16
                 + 7 * o_pad * tl * 2               # rhs3
                 + o_pad * tl * 4)                  # out f32
    need = 2 * w_bytes + 2 * (x_blk + o_blk) + tmp_bytes
    vmem_limit = int(min(max(2 * need + (2 << 20), 16 << 20), 48 << 20))
    if 2 * need + (2 << 20) > (48 << 20):
        vmem_limit = int(min(2 * need + (2 << 20), 112 << 20))

    out = pl.pallas_call(
        kernel,
        out_shape=jax.ShapeDtypeStruct((n, o_pad, l_out_pad), out_dtype),
        grid_spec=grid_spec,
        compiler_params=pltpu.CompilerParams(
            dimension_semantics=("parallel", "parallel"),
            vmem_limit_bytes=vmem_limit),
    )(xg, w1k, w2k, w3k, b1p, b2p, b3p)

    return out[:, :o_ch, :l_out]


# ---------------------------------------------------------------------------
# Deterministic parameters (conv weights + eval-mode BN folded to scale/bias)
# ---------------------------------------------------------------------------
def make_params(key, in_ch, out_ch):
    ks = jax.random.split(key, 12)

    def bn_fold(kg, kb, km, kv, ch, eps=1e-5):
        gamma = 1.0 + 0.1 * jax.random.normal(kg, (ch, 1), jnp.float32)
        beta = 0.1 * jax.random.normal(kb, (ch, 1), jnp.float32)
        mean = 0.1 * jax.random.normal(km, (ch, 1), jnp.float32)
        var = jax.random.uniform(kv, (ch, 1), jnp.float32, 0.5, 1.5)
        scale = gamma / jnp.sqrt(var + eps)
        bias = beta - mean * scale
        return scale, bias

    w1 = 0.3 * jax.random.normal(ks[0], (out_ch, in_ch, 3), jnp.float32)
    w2 = 0.3 * jax.random.normal(ks[1], (out_ch, out_ch, 5), jnp.float32)
    w3 = 0.3 * jax.random.normal(ks[2], (out_ch, out_ch, 7), jnp.float32)
    s1, b1 = bn_fold(ks[3], ks[4], ks[5], ks[6], out_ch)
    s2, b2 = bn_fold(ks[7], ks[8], ks[9], ks[10], out_ch)
    s3, b3 = bn_fold(ks[11], ks[0], ks[1], ks[2], out_ch)
    return (w1, w2, w3, s1, b1, s2, b2, s3, b3)


# ---------------------------------------------------------------------------
# References
# ---------------------------------------------------------------------------
def _reference_f32(x, params, stride=1):
    """Pure f32 reference matching nn.Conv1d + eval-mode BatchNorm1d + ReLU."""
    w1, w2, w3, s1, b1, s2, b2, s3, b3 = params
    dn = ("NCH", "OIH", "NCH")
    conv = lambda h, w, pad, st: lax.conv_general_dilated(
        h, w, (st,), [(pad, pad)], dimension_numbers=dn)
    h = jnp.maximum(conv(x, w1, 1, stride) * s1[None] + b1[None], 0.0)
    h = jnp.maximum(conv(h, w2, 2, 1) * s2[None] + b2[None], 0.0)
    return conv(h, w3, 3, 1) * s3[None] + b3[None]


def _reference_bf16(x, params, stride=1):
    """Same math at the kernel's operand precision (bf16 operands, f32 accumulation)."""
    w1f, w2f, w3f, b1, b2, b3 = _fold_bn(params)
    dn = ("NCH", "OIH", "NCH")

    def conv(h, w, pad, st):
        return lax.conv_general_dilated(h.astype(jnp.bfloat16), w, (st,),
                                        [(pad, pad)], dimension_numbers=dn,
                                        preferred_element_type=jnp.float32)

    h = jnp.maximum(conv(x, w1f, 1, stride) + b1[None], 0.0)
    h = jnp.maximum(conv(h, w2f, 2, 1) + b2[None], 0.0)
    return conv(h, w3f, 3, 1) + b3[None]


# ---------------------------------------------------------------------------
# Test
# ---------------------------------------------------------------------------
if __name__ == "__main__":
    key = jax.random.PRNGKey(0)
    k1, k2, k3 = jax.random.split(key, 3)

    def check(n, c_in, o_ch, length, stride, k, **fwd_kwargs):
        kx, kp = jax.random.split(k)
        x = jax.random.normal(kx, (n, c_in, length), jnp.float32)
        params = make_params(kp, c_in, o_ch)
        out = jax.block_until_ready(layer_forward(x, params, stride=stride,
                                                  **fwd_kwargs))
        ref_bf = _reference_bf16(x, params, stride=stride)
        ref_f32 = _reference_f32(x, params, stride=stride)
        assert out.shape == ref_f32.shape, (out.shape, ref_f32.shape)
        err_bf = float(jnp.max(jnp.abs(out - ref_bf)))
        assert jnp.allclose(out, ref_bf, atol=1e-2, rtol=1e-2), err_bf
        err_f32 = float(jnp.max(jnp.abs(out - ref_f32)))
        assert jnp.allclose(out, ref_f32, atol=2.5e-1, rtol=2.5e-1), err_f32

    # module-sized case: batch=2, in_ch=4, out_ch=8, L=16, stride=1 (in-kernel im2col path)
    check(2, 4, 8, 16, 1, k1)
    # stride=1, multiple length tiles: exercises halo masks of the in-kernel im2col path
    check(2, 4, 8, 300, 1, k2, tl=128)
    # stride=2: wrapper-side im2col path, channel padding, multiple length tiles
    check(3, 5, 6, 300, 2, k3, tl=128)

    print("KERNEL_OK")
</pallas_src>

<mosaic_0001>
module attributes {stable_mosaic.version = 11 : i64} {
  func.func @_layer_kernel(%arg0: i32, %arg1: i32, %arg2: memref<1x1x16x140xbf16, #tpu.memory_space<vmem>>, %arg3: memref<16x48xbf16, #tpu.memory_space<vmem>>, %arg4: memref<16x80xbf16, #tpu.memory_space<vmem>>, %arg5: memref<16x112xbf16, #tpu.memory_space<vmem>>, %arg6: memref<16x1xf32, #tpu.memory_space<vmem>>, %arg7: memref<16x1xf32, #tpu.memory_space<vmem>>, %arg8: memref<16x1xf32, #tpu.memory_space<vmem>>, %arg9: memref<1x16x128xf32, #tpu.memory_space<vmem>>) attributes {dimension_semantics = [#tpu.dimension_semantics<parallel>, #tpu.dimension_semantics<parallel>], iteration_bounds = array<i64: 2, 1>, scalar_prefetch = 0 : i64, scratch_operands = 0 : i64, tpu.core_type = #tpu.core_type<tc>, window_params = [{transform_indices = @transform_0, window_bounds = array<i64: 1, 1, 16, 140>}, {pipeline_mode = #tpu.pipeline_mode<synchronous>, transform_indices = @transform_1, window_bounds = array<i64: 16, 48>}, {pipeline_mode = #tpu.pipeline_mode<synchronous>, transform_indices = @transform_2, window_bounds = array<i64: 16, 80>}, {pipeline_mode = #tpu.pipeline_mode<synchronous>, transform_indices = @transform_3, window_bounds = array<i64: 16, 112>}, {pipeline_mode = #tpu.pipeline_mode<synchronous>, transform_indices = @transform_4, window_bounds = array<i64: 16, 1>}, {pipeline_mode = #tpu.pipeline_mode<synchronous>, transform_indices = @transform_5, window_bounds = array<i64: 16, 1>}, {pipeline_mode = #tpu.pipeline_mode<synchronous>, transform_indices = @transform_6, window_bounds = array<i64: 16, 1>}, {transform_indices = @transform_7, window_bounds = array<i64: 1, 16, 128>}]} {
    %c128_i32 = arith.constant 128 : i32
    %0 = arith.muli %arg1, %c128_i32 : i32
    %c5_i32 = arith.constant 5 : i32
    %1 = arith.subi %0, %c5_i32 : i32
    %2 = tpu.iota {dimensions = array<i32: 1>} : vector<1x138xi32>
    %3 = vector.broadcast %1 : i32 to vector<1x138xi32>
    %4 = arith.addi %3, %2 : vector<1x138xi32>
    %c0_i32 = arith.constant 0 : i32
    %5 = vector.broadcast %c0_i32 : i32 to vector<1x138xi32>
    %6 = arith.cmpi sge, %4, %5 : vector<1x138xi32>
    %c16_i32 = arith.constant 16 : i32
    %7 = vector.broadcast %c16_i32 : i32 to vector<1x138xi32>
    %8 = arith.cmpi slt, %4, %7 : vector<1x138xi32>
    %9 = arith.andi %6, %8 : vector<1x138xi1>
    %c3_i32 = arith.constant 3 : i32
    %10 = arith.subi %0, %c3_i32 : i32
    %11 = tpu.iota {dimensions = array<i32: 1>} : vector<1x134xi32>
    %12 = vector.broadcast %10 : i32 to vector<1x134xi32>
    %13 = arith.addi %12, %11 : vector<1x134xi32>
    %c0_i32_0 = arith.constant 0 : i32
    %14 = vector.broadcast %c0_i32_0 : i32 to vector<1x134xi32>
    %15 = arith.cmpi sge, %13, %14 : vector<1x134xi32>
    %c16_i32_1 = arith.constant 16 : i32
    %16 = vector.broadcast %c16_i32_1 : i32 to vector<1x134xi32>
    %17 = arith.cmpi slt, %13, %16 : vector<1x134xi32>
    %18 = arith.andi %15, %17 : vector<1x134xi1>
    %c0 = arith.constant 0 : index
    %c0_2 = arith.constant 0 : index
    %c0_3 = arith.constant 0 : index
    %c0_4 = arith.constant 0 : index
    %19 = vector.load %arg2[%c0, %c0_2, %c0_3, %c0_4] : memref<1x1x16x140xbf16, #tpu.memory_space<vmem>>, vector<1x1x16x140xbf16>
    %20 = vector.shape_cast %19 : vector<1x1x16x140xbf16> to vector<16x140xbf16>
    %21 = vector.extract_strided_slice %20 {offsets = [0, 0], sizes = [16, 138], strides = [1, 1]} : vector<16x140xbf16> to vector<16x138xbf16>
    %22 = vector.extract_strided_slice %20 {offsets = [0, 1], sizes = [16, 138], strides = [1, 1]} : vector<16x140xbf16> to vector<16x138xbf16>
    %23 = vector.extract_strided_slice %20 {offsets = [0, 2], sizes = [16, 138], strides = [1, 1]} : vector<16x140xbf16> to vector<16x138xbf16>
    %24 = tpu.concatenate %21, %22, %23 in 0 : vector<16x138xbf16>, vector<16x138xbf16>, vector<16x138xbf16> -> vector<48x138xbf16>
    %c0_5 = arith.constant 0 : index
    %c0_6 = arith.constant 0 : index
    %25 = vector.load %arg3[%c0_5, %c0_6] : memref<16x48xbf16, #tpu.memory_space<vmem>>, vector<16x48xbf16>
    %cst = arith.constant dense<0.000000e+00> : vector<16x138xf32>
    %26 = tpu.matmul %25, %24, %cst {dimension_numbers = #tpu.dot_dimension_numbers<[1], [0], [0], [1], [0, 0, 1, 1], [], []>} : vector<16x48xbf16>, vector<48x138xbf16>, vector<16x138xf32> -> vector<16x138xf32>
    %c0_7 = arith.constant 0 : index
    %c0_8 = arith.constant 0 : index
    %27 = vector.load %arg6[%c0_7, %c0_8] : memref<16x1xf32, #tpu.memory_space<vmem>>, vector<16x1xf32>
    %28 = vector.broadcast %27 : vector<16x1xf32> to vector<16x138xf32>
    %29 = arith.addf %26, %28 : vector<16x138xf32>
    %cst_9 = arith.constant 0.000000e+00 : f32
    %30 = vector.broadcast %cst_9 : f32 to vector<16x138xf32>
    %31 = arith.maximumf %29, %30 : vector<16x138xf32>
    %cst_10 = arith.constant 0.000000e+00 : f32
    %32 = vector.shape_cast %9 : vector<1x138xi1> to vector<1x138xi1>
    %33 = vector.broadcast %32 : vector<1x138xi1> to vector<16x138xi1>
    %34 = vector.broadcast %cst_10 : f32 to vector<16x138xf32>
    %35 = arith.select %33, %31, %34 : vector<16x138xi1>, vector<16x138xf32>
    %36 = arith.truncf %35 : vector<16x138xf32> to vector<16x138xbf16>
    %37 = vector.extract_strided_slice %36 {offsets = [0, 0], sizes = [16, 134], strides = [1, 1]} : vector<16x138xbf16> to vector<16x134xbf16>
    %38 = vector.extract_strided_slice %36 {offsets = [0, 1], sizes = [16, 134], strides = [1, 1]} : vector<16x138xbf16> to vector<16x134xbf16>
    %39 = vector.extract_strided_slice %36 {offsets = [0, 2], sizes = [16, 134], strides = [1, 1]} : vector<16x138xbf16> to vector<16x134xbf16>
    %40 = vector.extract_strided_slice %36 {offsets = [0, 3], sizes = [16, 134], strides = [1, 1]} : vector<16x138xbf16> to vector<16x134xbf16>
    %41 = vector.extract_strided_slice %36 {offsets = [0, 4], sizes = [16, 134], strides = [1, 1]} : vector<16x138xbf16> to vector<16x134xbf16>
    %42 = tpu.concatenate %37, %38, %39, %40, %41 in 0 : vector<16x134xbf16>, vector<16x134xbf16>, vector<16x134xbf16>, vector<16x134xbf16>, vector<16x134xbf16> -> vector<80x134xbf16>
    %c0_11 = arith.constant 0 : index
    %c0_12 = arith.constant 0 : index
    %43 = vector.load %arg4[%c0_11, %c0_12] : memref<16x80xbf16, #tpu.memory_space<vmem>>, vector<16x80xbf16>
    %cst_13 = arith.constant dense<0.000000e+00> : vector<16x134xf32>
    %44 = tpu.matmul %43, %42, %cst_13 {dimension_numbers = #tpu.dot_dimension_numbers<[1], [0], [0], [1], [0, 0, 1, 1], [], []>} : vector<16x80xbf16>, vector<80x134xbf16>, vector<16x134xf32> -> vector<16x134xf32>
    %c0_14 = arith.constant 0 : index
    %c0_15 = arith.constant 0 : index
    %45 = vector.load %arg7[%c0_14, %c0_15] : memref<16x1xf32, #tpu.memory_space<vmem>>, vector<16x1xf32>
    %46 = vector.broadcast %45 : vector<16x1xf32> to vector<16x134xf32>
    %47 = arith.addf %44, %46 : vector<16x134xf32>
    %cst_16 = arith.constant 0.000000e+00 : f32
    %48 = vector.broadcast %cst_16 : f32 to vector<16x134xf32>
    %49 = arith.maximumf %47, %48 : vector<16x134xf32>
    %cst_17 = arith.constant 0.000000e+00 : f32
    %50 = vector.shape_cast %18 : vector<1x134xi1> to vector<1x134xi1>
    %51 = vector.broadcast %50 : vector<1x134xi1> to vector<16x134xi1>
    %52 = vector.broadcast %cst_17 : f32 to vector<16x134xf32>
    %53 = arith.select %51, %49, %52 : vector<16x134xi1>, vector<16x134xf32>
    %54 = arith.truncf %53 : vector<16x134xf32> to vector<16x134xbf16>
    %55 = vector.extract_strided_slice %54 {offsets = [0, 0], sizes = [16, 128], strides = [1, 1]} : vector<16x134xbf16> to vector<16x128xbf16>
    %56 = vector.extract_strided_slice %54 {offsets = [0, 1], sizes = [16, 128], strides = [1, 1]} : vector<16x134xbf16> to vector<16x128xbf16>
    %57 = vector.extract_strided_slice %54 {offsets = [0, 2], sizes = [16, 128], strides = [1, 1]} : vector<16x134xbf16> to vector<16x128xbf16>
    %58 = vector.extract_strided_slice %54 {offsets = [0, 3], sizes = [16, 128], strides = [1, 1]} : vector<16x134xbf16> to vector<16x128xbf16>
    %59 = vector.extract_strided_slice %54 {offsets = [0, 4], sizes = [16, 128], strides = [1, 1]} : vector<16x134xbf16> to vector<16x128xbf16>
    %60 = vector.extract_strided_slice %54 {offsets = [0, 5], sizes = [16, 128], strides = [1, 1]} : vector<16x134xbf16> to vector<16x128xbf16>
    %61 = vector.extract_strided_slice %54 {offsets = [0, 6], sizes = [16, 128], strides = [1, 1]} : vector<16x134xbf16> to vector<16x128xbf16>
    %62 = tpu.concatenate %55, %56, %57, %58, %59, %60, %61 in 0 : vector<16x128xbf16>, vector<16x128xbf16>, vector<16x128xbf16>, vector<16x128xbf16>, vector<16x128xbf16>, vector<16x128xbf16>, vector<16x128xbf16> -> vector<112x128xbf16>
    %c0_18 = arith.constant 0 : index
    %c0_19 = arith.constant 0 : index
    %63 = vector.load %arg5[%c0_18, %c0_19] : memref<16x112xbf16, #tpu.memory_space<vmem>>, vector<16x112xbf16>
    %cst_20 = arith.constant dense<0.000000e+00> : vector<16x128xf32>
    %64 = tpu.matmul %63, %62, %cst_20 {dimension_numbers = #tpu.dot_dimension_numbers<[1], [0], [0], [1], [0, 0, 1, 1], [], []>} : vector<16x112xbf16>, vector<112x128xbf16>, vector<16x128xf32> -> vector<16x128xf32>
    %c0_21 = arith.constant 0 : index
    %c0_22 = arith.constant 0 : index
    %65 = vector.load %arg8[%c0_21, %c0_22] : memref<16x1xf32, #tpu.memory_space<vmem>>, vector<16x1xf32>
    %66 = vector.broadcast %65 : vector<16x1xf32> to vector<16x128xf32>
    %67 = arith.addf %64, %66 : vector<16x128xf32>
    %c0_23 = arith.constant 0 : index
    %c0_24 = arith.constant 0 : index
    %c0_25 = arith.constant 0 : index
    %68 = vector.load %arg9[%c0_23, %c0_24, %c0_25] : memref<1x16x128xf32, #tpu.memory_space<vmem>>, vector<1x16x128xf32>
    %69 = vector.shape_cast %68 : vector<1x16x128xf32> to vector<16x128xf32>
    %70 = vector.shape_cast %67 : vector<16x128xf32> to vector<1x16x128xf32>
    tpu.vector_store %arg9[%c0_23, %c0_24, %c0_25], %70 {strides = array<i32>} : memref<1x16x128xf32, #tpu.memory_space<vmem>>, vector<1x16x128xf32>,
    return
  }
  func.func @transform_0(%arg0: i32, %arg1: i32) -> (i32, i32, i32, i32) {
    %c0_i32 = arith.constant 0 : i32
    %c0_i32_0 = arith.constant 0 : i32
    %c0_i32_1 = arith.constant 0 : i32
    return %arg0, %arg1, %c0_i32, %c0_i32_0 : i32, i32, i32, i32
  }
  func.func @transform_1(%arg0: i32, %arg1: i32) -> (i32, i32) {
    %c0_i32 = arith.constant 0 : i32
    %c0_i32_0 = arith.constant 0 : i32
    %c0_i32_1 = arith.constant 0 : i32
    return %c0_i32, %c0_i32_0 : i32, i32
  }
  func.func @transform_2(%arg0: i32, %arg1: i32) -> (i32, i32) {
    %c0_i32 = arith.constant 0 : i32
    %c0_i32_0 = arith.constant 0 : i32
    %c0_i32_1 = arith.constant 0 : i32
    return %c0_i32, %c0_i32_0 : i32, i32
  }
  func.func @transform_3(%arg0: i32, %arg1: i32) -> (i32, i32) {
    %c0_i32 = arith.constant 0 : i32
    %c0_i32_0 = arith.constant 0 : i32
    %c0_i32_1 = arith.constant 0 : i32
    return %c0_i32, %c0_i32_0 : i32, i32
  }
  func.func @transform_4(%arg0: i32, %arg1: i32) -> (i32, i32) {
    %c0_i32 = arith.constant 0 : i32
    %c0_i32_0 = arith.constant 0 : i32
    %c0_i32_1 = arith.constant 0 : i32
    return %c0_i32, %c0_i32_0 : i32, i32
  }
  func.func @transform_5(%arg0: i32, %arg1: i32) -> (i32, i32) {
    %c0_i32 = arith.constant 0 : i32
    %c0_i32_0 = arith.constant 0 : i32
    %c0_i32_1 = arith.constant 0 : i32
    return %c0_i32, %c0_i32_0 : i32, i32
  }
  func.func @transform_6(%arg0: i32, %arg1: i32) -> (i32, i32) {
    %c0_i32 = arith.constant 0 : i32
    %c0_i32_0 = arith.constant 0 : i32
    %c0_i32_1 = arith.constant 0 : i32
    return %c0_i32, %c0_i32_0 : i32, i32
  }
  func.func @transform_7(%arg0: i32, %arg1: i32) -> (i32, i32, i32) {
    %c0_i32 = arith.constant 0 : i32
    %c0_i32_0 = arith.constant 0 : i32
    return %arg0, %c0_i32, %arg1 : i32, i32, i32
  }
}

</mosaic_0001>

<llo_original>
// kernel: tpu_custom_call.1
$region0: #{tpu_custom_call.1}
  #allocation0 [shape = 'u32[]', space=smem, size = 0x4, offset = 0x4, fixed_abs, tag = 'smem constant byte address 0x4 - core index']
  #allocation1 [shape = 'u32[144,128]{1,0:T(1,128)}', space=vmem, size = 0x12000, scoped, tag = 'internal scratch']
  %s0 = inlined_call_operand.vmem [shape: bf16[2,1,16,140], index: 0, kind: input, shape index: {}]
  %s1 = inlined_call_operand.vmem [shape: bf16[16,48], index: 1, kind: input, shape index: {}]
  %s2 = inlined_call_operand.vmem [shape: bf16[16,80], index: 2, kind: input, shape index: {}]
  %s3 = inlined_call_operand.vmem [shape: bf16[16,112], index: 3, kind: input, shape index: {}]
  %s4 = inlined_call_operand.vmem [shape: f32[16,1], index: 4, kind: input, shape index: {}]
  %s5 = inlined_call_operand.vmem [shape: f32[16,1], index: 5, kind: input, shape index: {}]
  %s6 = inlined_call_operand.vmem [shape: f32[16,1], index: 6, kind: input, shape index: {}]
  %s7 = inlined_call_operand.hbm [shape: f32[2,16,128], index: 7, kind: output, shape index: {}]
  %s8 = sld [smem:[#allocation0]]
  $region61: #{tpu_custom_call.1} parent=0
    _
  %s10 = ssub.s32 1, %s8
  %s11 = scalar_select 0, %s10, %s8
  $region1: #{tpu_custom_call.1} parent=0
    #allocation2 [shape = 'u8[16384]{0}', space=vmem, size = 0x4000, scoped, tag = 'output window, operand 0']
    #allocation3 [shape = 's32[2]{0}', space=sflag, size = 0x8, scoped, tag = 'scoped memory for tpu_custom_call.1']
    %12 = vsyncpa [#allocation3], 0
    %s13 = scalar_lea.sflag [#allocation3], 1
    %14 = vsyncpa %s13, 0
    loop: start=0, step=1, limit=4
    $region2: #{tpu_custom_call.1} parent=1 // loop_pre_header
      _
    $region3: #{tpu_custom_call.1} parent=1 // loop_header
      %s16 = sphi 0, %s20
      %p17 = scmp.ge.s32.totalorder %s16, 4
      %s23 = sphi 0, %s35
      %s24 = sphi 0, %s31
      %s25 = sphi 0, %s23
      %s26 = sphi 0, %s24
      %s27 = sphi 0, %s25
      %s28 = sphi 0, %s26
      %s40 = sphi 0, %s42
      %s43 = sphi 0, %s40
      %s44 = sphi 0, %s43
      %s60 = sphi 0, %s44
      %s64 = sphi 0, %s64
      %s66 = sphi 0, %s64
      %s67 = sphi 0, %s66
      %s81 = sphi 0, %s67
      %s85 = sphi 0, %s85
      %s87 = sphi 0, %s85
      %s88 = sphi 0, %s87
      %s102 = sphi 0, %s88
      %s106 = sphi 0, %s106
      %s108 = sphi 0, %s106
      %s109 = sphi 0, %s108
      %s123 = sphi 0, %s109
      %s127 = sphi 0, %s127
      %s129 = sphi 0, %s127
      %s130 = sphi 0, %s129
      %s144 = sphi 0, %s130
      %s148 = sphi 0, %s148
      %s150 = sphi 0, %s148
      %s151 = sphi 0, %s150
      %s165 = sphi 0, %s151
      %s169 = sphi 0, %s169
      %s171 = sphi 0, %s169
      %s172 = sphi 0, %s171
      %s186 = sphi 0, %s172
      %s194 = sphi 0, %s196
      %s197 = sphi 0, %s194
      %s198 = sphi 0, %s197
      %s214 = sphi 0, %s198
    $region4: #{tpu_custom_call.1} parent=1 // loop_header_branch
      %19 = sbr.rel (%p17) target = $region8
    $region5: #{tpu_custom_call.1} parent=1 // loop_body
      %s21 = ssub.s32 %s16, 1
      %s22 = ssub.s32 %s16, 2
      %s29 = sadd.s32 1, %s24
      %p30 = scmp.ge.s32.totalorder %s29, 1
      %s31 = scalar_select %p30, 0, %s29
      %s32 = sadd.s32 1, %s23
      %s33 = scalar_select %p30, %s32, %s23
      %p34 = scmp.ge.s32.totalorder %s33, 2
      %s35 = scalar_select %p34, 0, %s33
      %s36 = ssub.s32 %s23, %s35
      %s37 = ssub.s32 %s24, %s31
      %s38 = sor.u32 %s36, %s37
      %p39 = scmp.eq.s32.totalorder %s38, 0
      %s41 = sadd.s32 %s40, 1
      %s42 = scalar_select %p39, %s40, %s41
      %p45 = pneg %p39
      %p46 = scmp.eq.s32.totalorder %s16, 1
      %p47 = por %p45, %p46
      %p48 = scmp.ne.s32.totalorder %s40, %s43
      %p49 = scmp.eq.s32.totalorder %s16, 0
      %p50 = por %p48, %p49
      %p51 = scmp.ne.s32.totalorder %s40, %s43
      %p52 = scmp.eq.s32.totalorder %s21, 1
      %p53 = por %p51, %p52
      %p54 = scmp.ne.s32.totalorder %s43, %s44
      %p55 = scmp.eq.s32.totalorder %s21, 0
      %p56 = por %p54, %p55
      %p57 = scmp.ne.s32.totalorder %s43, %s44
      %p58 = scmp.eq.s32.totalorder %s22, 1
      %p59 = por %p57, %p58
      %p61 = scmp.ne.s32.totalorder %s44, %s60
      %p62 = scmp.eq.s32.totalorder %s22, 0
      %p63 = por %p61, %p62
      %s65 = sadd.s32 %s64, 1
      %p68 = scmp.eq.s32.totalorder %s16, 1
      %p69 = scmp.ne.s32.totalorder %s64, %s66
      %p70 = scmp.eq.s32.totalorder %s16, 0
      %p71 = por %p69, %p70
      %p72 = scmp.ne.s32.totalorder %s64, %s66
      %p73 = scmp.eq.s32.totalorder %s21, 1
      %p74 = por %p72, %p73
      %p75 = scmp.ne.s32.totalorder %s66, %s67
      %p76 = scmp.eq.s32.totalorder %s21, 0
      %p77 = por %p75, %p76
      %p78 = scmp.ne.s32.totalorder %s66, %s67
      %p79 = scmp.eq.s32.totalorder %s22, 1
      %p80 = por %p78, %p79
      %p82 = scmp.ne.s32.totalorder %s67, %s81
      %p83 = scmp.eq.s32.totalorder %s22, 0
      %p84 = por %p82, %p83
      %s86 = sadd.s32 %s85, 1
      %p89 = scmp.eq.s32.totalorder %s16, 1
      %p90 = scmp.ne.s32.totalorder %s85, %s87
      %p91 = scmp.eq.s32.totalorder %s16, 0
      %p92 = por %p90, %p91
      %p93 = scmp.ne.s32.totalorder %s85, %s87
      %p94 = scmp.eq.s32.totalorder %s21, 1
      %p95 = por %p93, %p94
      %p96 = scmp.ne.s32.totalorder %s87, %s88
      %p97 = scmp.eq.s32.totalorder %s21, 0
      %p98 = por %p96, %p97
      %p99 = scmp.ne.s32.totalorder %s87, %s88
      %p100 = scmp.eq.s32.totalorder %s22, 1
      %p101 = por %p99, %p100
      %p103 = scmp.ne.s32.totalorder %s88, %s102
      %p104 = scmp.eq.s32.totalorder %s22, 0
      %p105 = por %p103, %p104
      %s107 = sadd.s32 %s106, 1
      %p110 = scmp.eq.s32.totalorder %s16, 1
      %p111 = scmp.ne.s32.totalorder %s106, %s108
      %p112 = scmp.eq.s32.totalorder %s16, 0
      %p113 = por %p111, %p112
      %p114 = scmp.ne.s32.totalorder %s106, %s108
      %p115 = scmp.eq.s32.totalorder %s21, 1
      %p116 = por %p114, %p115
      %p117 = scmp.ne.s32.totalorder %s108, %s109
      %p118 = scmp.eq.s32.totalorder %s21, 0
      %p119 = por %p117, %p118
      %p120 = scmp.ne.s32.totalorder %s108, %s109
      %p121 = scmp.eq.s32.totalorder %s22, 1
      %p122 = por %p120, %p121
      %p124 = scmp.ne.s32.totalorder %s109, %s123
      %p125 = scmp.eq.s32.totalorder %s22, 0
      %p126 = por %p124, %p125
      %s128 = sadd.s32 %s127, 1
      %p131 = scmp.eq.s32.totalorder %s16, 1
      %p132 = scmp.ne.s32.totalorder %s127, %s129
      %p133 = scmp.eq.s32.totalorder %s16, 0
      %p134 = por %p132, %p133
      %p135 = scmp.ne.s32.totalorder %s127, %s129
      %p136 = scmp.eq.s32.totalorder %s21, 1
      %p137 = por %p135, %p136
      %p138 = scmp.ne.s32.totalorder %s129, %s130
      %p139 = scmp.eq.s32.totalorder %s21, 0
      %p140 = por %p138, %p139
      %p141 = scmp.ne.s32.totalorder %s129, %s130
      %p142 = scmp.eq.s32.totalorder %s22, 1
      %p143 = por %p141, %p142
      %p145 = scmp.ne.s32.totalorder %s130, %s144
      %p146 = scmp.eq.s32.totalorder %s22, 0
      %p147 = por %p145, %p146
      %s149 = sadd.s32 %s148, 1
      %p152 = scmp.eq.s32.totalorder %s16, 1
      %p153 = scmp.ne.s32.totalorder %s148, %s150
      %p154 = scmp.eq.s32.totalorder %s16, 0
      %p155 = por %p153, %p154
      %p156 = scmp.ne.s32.totalorder %s148, %s150
      %p157 = scmp.eq.s32.totalorder %s21, 1
      %p158 = por %p156, %p157
      %p159 = scmp.ne.s32.totalorder %s150, %s151
      %p160 = scmp.eq.s32.totalorder %s21, 0
      %p161 = por %p159, %p160
      %p162 = scmp.ne.s32.totalorder %s150, %s151
      %p163 = scmp.eq.s32.totalorder %s22, 1
      %p164 = por %p162, %p163
      %p166 = scmp.ne.s32.totalorder %s151, %s165
      %p167 = scmp.eq.s32.totalorder %s22, 0
      %p168 = por %p166, %p167
      %s170 = sadd.s32 %s169, 1
      %p173 = scmp.eq.s32.totalorder %s16, 1
      %p174 = scmp.ne.s32.totalorder %s169, %s171
      %p175 = scmp.eq.s32.totalorder %s16, 0
      %p176 = por %p174, %p175
      %p177 = scmp.ne.s32.totalorder %s169, %s171
      %p178 = scmp.eq.s32.totalorder %s21, 1
      %p179 = por %p177, %p178
      %p180 = scmp.ne.s32.totalorder %s171, %s172
      %p181 = scmp.eq.s32.totalorder %s21, 0
      %p182 = por %p180, %p181
      %p183 = scmp.ne.s32.totalorder %s171, %s172
      %p184 = scmp.eq.s32.totalorder %s22, 1
      %p185 = por %p183, %p184
      %p187 = scmp.ne.s32.totalorder %s172, %s186
      %p188 = scmp.eq.s32.totalorder %s22, 0
      %p189 = por %p187, %p188
      %s190 = ssub.s32 %s23, %s35
      %s191 = ssub.s32 %s24, %s31
      %s192 = sor.u32 %s190, %s191
      %p193 = scmp.eq.s32.totalorder %s192, 0
      %s195 = sadd.s32 %s194, 1
      %s196 = scalar_select %p193, %s194, %s195
      %p199 = pneg %p193
      %p200 = scmp.eq.s32.totalorder %s16, 1
      %p201 = por %p199, %p200
      %p202 = scmp.ne.s32.totalorder %s194, %s197
      %p203 = scmp.eq.s32.totalorder %s16, 0
      %p204 = por %p202, %p203
      %p205 = scmp.ne.s32.totalorder %s194, %s197
      %p206 = scmp.eq.s32.totalorder %s21, 1
      %p207 = por %p205, %p206
      %p208 = scmp.ne.s32.totalorder %s197, %s198
      %p209 = scmp.eq.s32.totalorder %s21, 0
      %p210 = por %p208, %p209
      %p211 = scmp.ne.s32.totalorder %s197, %s198
      %p212 = scmp.eq.s32.totalorder %s22, 1
      %p213 = por %p211, %p212
      %p215 = scmp.ne.s32.totalorder %s198, %s214
      %p216 = scmp.eq.s32.totalorder %s22, 0
      %p217 = por %p215, %p216
      %p218 = scmp.le.s32.totalorder 1, %s16
      %p219 = scmp.lt.s32.totalorder %s16, 3
      %p220 = pnand %p218, %p219
      %p221 = pneg %p220
      // Predicated region
      $region9: #{tpu_custom_call.1} parent=5 // pred_check
        _
      $region10: #{tpu_custom_call.1} parent=5 // pred_check_branch
        %223 = sbr.rel (%p220) target = $region12
      $region11: #{tpu_custom_call.1} parent=5 // pred_region
        %s224 = ssub.s32 %s16, 1
        // Predicated region
        $region13: #{tpu_custom_call.1} parent=11 // pred_check
          %p225 = pneg %p77
        $region14: #{tpu_custom_call.1} parent=11 // pred_check_branch
          %227 = sbr.rel (%p225) target = $region16
        $region15: #{tpu_custom_call.1} parent=11 // pred_region
          _
        $region16: #{tpu_custom_call.1} parent=11 // pred_fallthru
          _
        // Predicated region
        $region17: #{tpu_custom_call.1} parent=11 // pred_check
          %p228 = pneg %p98
        $region18: #{tpu_custom_call.1} parent=11 // pred_check_branch
          %230 = sbr.rel (%p228) target = $region20
        $region19: #{tpu_custom_call.1} parent=11 // pred_region
          _
        $region20: #{tpu_custom_call.1} parent=11 // pred_fallthru
          _
        // Predicated region
        $region21: #{tpu_custom_call.1} parent=11 // pred_check
          %p231 = pneg %p119
        $region22: #{tpu_custom_call.1} parent=11 // pred_check_branch
          %233 = sbr.rel (%p231) target = $region24
        $region23: #{tpu_custom_call.1} parent=11 // pred_region
          _
        $region24: #{tpu_custom_call.1} parent=11 // pred_fallthru
          _
        // Predicated region
        $region25: #{tpu_custom_call.1} parent=11 // pred_check
          %p234 = pneg %p140
        $region26: #{tpu_custom_call.1} parent=11 // pred_check_branch
          %236 = sbr.rel (%p234) target = $region28
        $region27: #{tpu_custom_call.1} parent=11 // pred_region
          _
        $region28: #{tpu_custom_call.1} parent=11 // pred_fallthru
          _
        // Predicated region
        $region29: #{tpu_custom_call.1} parent=11 // pred_check
          %p237 = pneg %p161
        $region30: #{tpu_custom_call.1} parent=11 // pred_check_branch
          %239 = sbr.rel (%p237) target = $region32
        $region31: #{tpu_custom_call.1} parent=11 // pred_region
          _
        $region32: #{tpu_custom_call.1} parent=11 // pred_fallthru
          _
        // Predicated region
        $region33: #{tpu_custom_call.1} parent=11 // pred_check
          %p240 = pneg %p182
        $region34: #{tpu_custom_call.1} parent=11 // pred_check_branch
          %242 = sbr.rel (%p240) target = $region36
        $region35: #{tpu_custom_call.1} parent=11 // pred_region
          _
        $region36: #{tpu_custom_call.1} parent=11 // pred_fallthru
          _
      $region12: #{tpu_custom_call.1} parent=5 // pred_fallthru
        _
      %p243 = scmp.lt.s32.totalorder %s16, 2
      // Predicated region
      $region37: #{tpu_custom_call.1} parent=5 // pred_check
        %p244 = pneg %p243
      $region38: #{tpu_custom_call.1} parent=5 // pred_check_branch
        %246 = sbr.rel (%p244) target = $region40
      $region39: #{tpu_custom_call.1} parent=5 // pred_region
        // Predicated region
        $region41: #{tpu_custom_call.1} parent=39 // pred_check
          %p247 = pneg %p50
        $region42: #{tpu_custom_call.1} parent=39 // pred_check_branch
          %249 = sbr.rel (%p247) target = $region44
        $region43: #{tpu_custom_call.1} parent=39 // pred_region
          %p250 = scmp.lt.s32.totalorder %s23, 1
          %s251 = scalar_select %p250, %s23, 1
          %p252 = scmp.lt.s32.totalorder %s24, 0
          %s253 = scalar_select %p252, %s24, 0
          %s254 = smul.addr %s253, 4
          %s255 = smul.addr %s251, 4
          %s256 = sadd.s32 %s254, %s255
          %s257 = smul.addr %s256, 4
          %s258 = scalar_lea.vmem %s0, %s257
        $region44: #{tpu_custom_call.1} parent=39 // pred_fallthru
          _
      $region40: #{tpu_custom_call.1} parent=5 // pred_fallthru
        _
      %p259 = scmp.le.s32.totalorder 1, %s16
      %p260 = scmp.lt.s32.totalorder %s16, 3
      %p261 = pnand %p259, %p260
      %p262 = pneg %p261
      // Predicated region
      $region45: #{tpu_custom_call.1} parent=5 // pred_check
        _
      $region46: #{tpu_custom_call.1} parent=5 // pred_check_branch
        %264 = sbr.rel (%p261) target = $region48
      $region47: #{tpu_custom_call.1} parent=5 // pred_region
        %s265 = ssub.s32 %s16, 1
        %p266 = scmp.lt.s32.totalorder %s25, 1
        %s267 = scalar_select %p266, %s25, 1
        %p268 = scmp.lt.s32.totalorder %s26, 0
        %s269 = scalar_select %p268, %s26, 0
        %s270 = smul.addr %s269, 4
        %s271 = smul.addr %s267, 4
        %s272 = sadd.s32 %s270, %s271
        %s273 = smul.addr %s272, 4
        %s274 = scalar_lea.vmem %s0, %s273
        %p275 = pneg %p56
        %p276 = pneg %p53
        %p277 = pneg %p77
        %p278 = pneg %p74
        %p279 = pneg %p98
        %p280 = pneg %p95
        %p281 = pneg %p119
        %p282 = pneg %p116
        %p283 = pneg %p140
        %p284 = pneg %p137
        %p285 = pneg %p161
        %p286 = pneg %p158
        %p287 = pneg %p182
        %p288 = pneg %p179
        %p289 = pneg %p210
        %p290 = pneg %p207
        %s291 = sand.u32 %s197, 1
        %s292 = scalar_lea.sflag [#allocation3], %s291
        %s293 = sand.u32 %s197, 1
        %s294 = smul.addr %s293, 16
        %s295 = scalar_lea.vmem [#allocation2], %s294
        %p296 = scmp.lt.s32.totalorder %s25, 1
        %s297 = scalar_select %p296, %s25, 1
        %p298 = scmp.lt.s32.totalorder %s26, 0
        %s299 = scalar_select %p298, %s26, 0
        %s300 = smul.addr %s299, 4
        %s301 = smul.addr %s297, 4
        %s302 = sadd.s32 %s300, %s301
        %s303 = smul.addr %s302, 4
        %s304 = scalar_lea.vmem %s0, %s303
        %s306 = smul.u32 %s26, 128
        %s307 = ssub.s32 %s306, 5
        %v308 = vlaneseq
        %v309 = vand.u32 %v308, 127
        %v310 = vadd.s32 %v309, 128
        %v311 = vstv %s307
        %v312 = vadd.s32 %v311, %v309
        %v313 = vadd.s32 %v311, %v310
        %vm314 = vcmp.ge.s32.totalorder %v312, 0
        %vm315 = vcmp.ge.s32.totalorder %v313, 0
        %vm316 = vcmp.lt.s32.totalorder %v312, 16
        %vm317 = vcmp.lt.s32.totalorder %v313, 16
        %vm318 = vmand %vm314, %vm316
        %vm319 = vmand %vm315, %vm317
        %s320 = ssub.s32 %s306, 3
        %v321 = vstv %s320
        %v322 = vadd.s32 %v321, %v309
        %v323 = vadd.s32 %v321, %v310
        %vm324 = vcmp.ge.s32.totalorder %v322, 0
        %vm325 = vcmp.ge.s32.totalorder %v323, 0
        %vm326 = vcmp.lt.s32.totalorder %v322, 16
        %vm327 = vcmp.lt.s32.totalorder %v323, 16
        %vm328 = vmand %vm324, %vm326
        %vm329 = vmand %vm325, %vm327
        %v330 = vld [vmem:[%s304] sm:$0xff]
        %v331 = vld [vmem:[%s304 + $0x8] sm:$0xff]
        %v334 = vunpack.c.l.b16 %v330
        %v335 = vunpack.c.h.b16 %v330
        %v336 = vunpack.c.l.b16 %v331
        %v337 = vunpack.c.h.b16 %v331
        %v338 = vpack.c.b16 %v336, %v334
        %v339 = vpack.c.b16 %v337, %v335
        %342 = vrot.lane.b32.xlu0 %v338, 127
        %v343 = vpop.permute.xlu0 %342
        %344 = vrot.lane.b32.xlu0 %v339, 127
        %v345 = vpop.permute.xlu0 %344
        %vm346 = vcmask 1039360
        %v347 = vsel %vm346, %v343, %v345
        %350 = vrot.lane.b32.xlu0 %v338, 126
        %v351 = vpop.permute.xlu0 %350
        %352 = vrot.lane.b32.xlu0 %v339, 126
        %v353 = vpop.permute.xlu0 %352
        %vm354 = vcmask 1031168
        %v355 = vsel %vm354, %v351, %v353
        %v358 = vld [vmem:[%s1] sm:$0xf]
        %v359 = vld [vmem:[%s1 + $0x4] sm:$0xf]
        %v360 = vld [vmem:[%s4] sm:$0xff]
        %v361 = vld [vmem:[%s4 + $0x8] sm:$0xff]
        %363 = vset.pattern.permute.xlu0 0
        %364 = vperm.xlu0 %363, %v360
        %v365 = vpop.permute.xlu0 %364
        %368 = vset.pattern.permute.xlu0 0
        %369 = vperm.xlu0 %368, %v361
        %v370 = vpop.permute.xlu0 %369
        %v374 = vunpack.c.l.b16 %v358
        %v375 = vunpack.c.l.b16 %v359
        %v376 = vpack.c.b16 %v375, %v374
        %vm377 = vcmask 392192
        %v379 = vsel %vm377, %v376, 0
        %381 = vmatprep.subr.bf16.mxu0 %v339
        %382 = vmatpush1.bf16.msra.mxu0 %v338
        %383 = vmatprep.subr.bf16.mxu0 %v345
        %384 = vmatpush1.bf16.msra.mxu0 %v347
        %385 = vmatprep.subr.bf16.mxu0 %v353
        %386 = vmatpush1.bf16.msra.mxu0 %v355
        %387 = vmatprep.subr.bf16.mxu0 0
        %388 = vmatpush1.bf16.msra.mxu0 0
        %389 = vmatprep.subr.bf16.mxu0 0
        %390 = vmatpush1.bf16.msra.mxu0 0
        %391 = vmatprep.subr.bf16.mxu0 0
        %392 = vmatpush1.bf16.msra.mxu0 0
        %393 = vmatprep.subr.bf16.mxu0 0
        %394 = vmatpush1.bf16.msra.mxu0 0
        %395 = vmatprep.subr.bf16.mxu0 0
        %396 = vmatpush1.bf16.msra.mxu0 0
        %397 = vmatprep.subr.bf16.mxu0 0
        %398 = vmatpush1.bf16.msra.mxu0 0
        %399 = vmatprep.subr.bf16.mxu0 0
        %400 = vmatpush1.bf16.msra.mxu0 0
        %401 = vmatprep.subr.bf16.mxu0 0
        %402 = vmatpush1.bf16.msra.mxu0 0
        %403 = vmatprep.subr.bf16.mxu0 0
        %404 = vmatpush1.bf16.msra.mxu0 0
        %405 = vmatprep.subr.bf16.mxu0 0
        %406 = vmatpush1.bf16.msra.mxu0 0
        %407 = vmatprep.subr.bf16.mxu0 0
        %408 = vmatpush1.bf16.msra.mxu0 0
        %409 = vmatprep.subr.bf16.mxu0 0
        %410 = vmatpush1.bf16.msra.mxu0 0
        %411 = vmatprep.subr.bf16.mxu0 0
        %412 = vmatpush1.bf16.msra.mxu0 0
        %413 = vmatprep.mubr.bf16.mxu0 0
        %414 = vmatmul.mubr.bf16.gmra.mrb[0].mxu0 %v379
        %v415 = vpop.f32.mrb[0].mxu0
        %v416 = vadd.f32 %v365, %v415
        %v417 = vpop.f32.mrb[0].mxu0
        %v418 = vadd.f32 %v365, %v417
        %v419 = vpop.f32.mrb[0].mxu0
        %v420 = vadd.f32 %v370, %v419
        %v421 = vpop.f32.mrb[0].mxu0
        %v422 = vadd.f32 %v370, %v421
        %423 = vdwg.mxu0
        %v424 = vmax.f32 %v416, 0.0
        %v425 = vmax.f32 %v418, 0.0
        %v426 = vmax.f32 %v420, 0.0
        %v427 = vmax.f32 %v422, 0.0
        %v428 = vsel %vm318, 1, 0
        %v429 = vsel %vm319, 1, 0
        %vm430 = vcmp.eq.s32.totalorder %v428, 1
        %vm431 = vcmp.eq.s32.totalorder %v429, 1
        %v432 = vsel %vm430, %v424, 0.0
        %v433 = vsel %vm431, %v425, 0.0
        %v434 = vsel %vm430, %v426, 0.0
        %v435 = vsel %vm431, %v427, 0.0
        %v436 = vpack.c.bf16 %v434, %v432
        %v437 = vpack.c.bf16 %v435, %v433
        %440 = vrot.lane.b32.xlu0 %v436, 127
        %v441 = vpop.permute.xlu0 %440
        %442 = vrot.lane.b32.xlu0 %v437, 127
        %v443 = vpop.permute.xlu0 %442
        %v444 = vsel %vm346, %v441, %v443
        %447 = vrot.lane.b32.xlu0 %v436, 126
        %v448 = vpop.permute.xlu0 %447
        %449 = vrot.lane.b32.xlu0 %v437, 126
        %v450 = vpop.permute.xlu0 %449
        %v451 = vsel %vm354, %v448, %v450
        %454 = vrot.lane.b32.xlu0 %v436, 125
        %v455 = vpop.permute.xlu0 %454
        %456 = vrot.lane.b32.xlu0 %v437, 125
        %v457 = vpop.permute.xlu0 %456
        %vm458 = vcmask 1022976
        %v459 = vsel %vm458, %v455, %v457
        %462 = vrot.lane.b32.xlu0 %v436, 124
        %v463 = vpop.permute.xlu0 %462
        %464 = vrot.lane.b32.xlu0 %v437, 124
        %v465 = vpop.permute.xlu0 %464
        %vm466 = vcmask 1014784
        %v467 = vsel %vm466, %v463, %v465
        %v470 = vld [vmem:[%s2] sm:$0xf]
        %v471 = vld [vmem:[%s2 + $0x4] sm:$0xf]
        %v472 = vld [vmem:[%s5] sm:$0xff]
        %v473 = vld [vmem:[%s5 + $0x8] sm:$0xff]
        %475 = vset.pattern.permute.xlu0 0
        %476 = vperm.xlu0 %475, %v472
        %v477 = vpop.permute.xlu0 %476
        %480 = vset.pattern.permute.xlu0 0
        %481 = vperm.xlu0 %480, %v473
        %v482 = vpop.permute.xlu0 %481
        %v486 = vunpack.c.l.b16 %v470
        %v487 = vunpack.c.l.b16 %v471
        %v488 = vpack.c.b16 %v487, %v486
        %vm489 = vcmask 654336
        %v491 = vsel %vm489, %v488, 0
        %493 = vmatprep.subr.bf16.mxu0 %v437
        %494 = vmatpush1.bf16.msra.mxu0 %v436
        %495 = vmatprep.subr.bf16.mxu0 %v443
        %496 = vmatpush1.bf16.msra.mxu0 %v444
        %497 = vmatprep.subr.bf16.mxu0 %v450
        %498 = vmatpush1.bf16.msra.mxu0 %v451
        %499 = vmatprep.subr.bf16.mxu0 %v457
        %500 = vmatpush1.bf16.msra.mxu0 %v459
        %501 = vmatprep.subr.bf16.mxu0 %v465
        %502 = vmatpush1.bf16.msra.mxu0 %v467
        %503 = vmatprep.subr.bf16.mxu0 0
        %504 = vmatpush1.bf16.msra.mxu0 0
        %505 = vmatprep.subr.bf16.mxu0 0
        %506 = vmatpush1.bf16.msra.mxu0 0
        %507 = vmatprep.subr.bf16.mxu0 0
        %508 = vmatpush1.bf16.msra.mxu0 0
        %509 = vmatprep.subr.bf16.mxu0 0
        %510 = vmatpush1.bf16.msra.mxu0 0
        %511 = vmatprep.subr.bf16.mxu0 0
        %512 = vmatpush1.bf16.msra.mxu0 0
        %513 = vmatprep.subr.bf16.mxu0 0
        %514 = vmatpush1.bf16.msra.mxu0 0
        %515 = vmatprep.subr.bf16.mxu0 0
        %516 = vmatpush1.bf16.msra.mxu0 0
        %517 = vmatprep.subr.bf16.mxu0 0
        %518 = vmatpush1.bf16.msra.mxu0 0
        %519 = vmatprep.subr.bf16.mxu0 0
        %520 = vmatpush1.bf16.msra.mxu0 0
        %521 = vmatprep.subr.bf16.mxu0 0
        %522 = vmatpush1.bf16.msra.mxu0 0
        %523 = vmatprep.subr.bf16.mxu0 0
        %524 = vmatpush1.bf16.msra.mxu0 0
        %525 = vmatprep.mubr.bf16.mxu0 0
        %526 = vmatmul.mubr.bf16.gmra.mrb[0].mxu0 %v491
        %v527 = vpop.f32.mrb[0].mxu0
        %v528 = vadd.f32 %v477, %v527
        %v529 = vpop.f32.mrb[0].mxu0
        %v530 = vadd.f32 %v477, %v529
        %v531 = vpop.f32.mrb[0].mxu0
        %v532 = vadd.f32 %v482, %v531
        %v533 = vpop.f32.mrb[0].mxu0
        %v534 = vadd.f32 %v482, %v533
        %535 = vdwg.mxu0
        %v536 = vmax.f32 %v528, 0.0
        %v537 = vmax.f32 %v530, 0.0
        %v538 = vmax.f32 %v532, 0.0
        %v539 = vmax.f32 %v534, 0.0
        %v540 = vsel %vm328, 1, 0
        %v541 = vsel %vm329, 1, 0
        %vm542 = vcmp.eq.s32.totalorder %v540, 1
        %vm543 = vcmp.eq.s32.totalorder %v541, 1
        %v544 = vsel %vm542, %v536, 0.0
        %v545 = vsel %vm543, %v537, 0.0
        %v546 = vsel %vm542, %v538, 0.0
        %v547 = vsel %vm543, %v539, 0.0
        %v548 = vpack.c.bf16 %v546, %v544
        %v549 = vpack.c.bf16 %v547, %v545
        %552 = vrot.lane.b32.xlu0 %v548, 127
        %v553 = vpop.permute.xlu0 %552
        %554 = vrot.lane.b32.xlu0 %v549, 127
        %v555 = vpop.permute.xlu0 %554
        %v556 = vsel %vm346, %v553, %v555
        %558 = vrot.lane.b32.xlu0 %v548, 126
        %v559 = vpop.permute.xlu0 %558
        %560 = vrot.lane.b32.xlu0 %v549, 126
        %v561 = vpop.permute.xlu0 %560
        %v562 = vsel %vm354, %v559, %v561
        %564 = vrot.lane.b32.xlu0 %v548, 125
        %v565 = vpop.permute.xlu0 %564
        %566 = vrot.lane.b32.xlu0 %v549, 125
        %v567 = vpop.permute.xlu0 %566
        %v568 = vsel %vm458, %v565, %v567
        %570 = vrot.lane.b32.xlu0 %v548, 124
        %v571 = vpop.permute.xlu0 %570
        %572 = vrot.lane.b32.xlu0 %v549, 124
        %v573 = vpop.permute.xlu0 %572
        %v574 = vsel %vm466, %v571, %v573
        %576 = vrot.lane.b32.xlu0 %v548, 123
        %v577 = vpop.permute.xlu0 %576
        %578 = vrot.lane.b32.xlu0 %v549, 123
        %v579 = vpop.permute.xlu0 %578
        %vm580 = vcmask 1006592
        %v581 = vsel %vm580, %v577, %v579
        %583 = vrot.lane.b32.xlu0 %v548, 122
        %v584 = vpop.permute.xlu0 %583
        %585 = vrot.lane.b32.xlu0 %v549, 122
        %v586 = vpop.permute.xlu0 %585
        %vm587 = vcmask 998400
        %v588 = vsel %vm587, %v584, %v586
        %v590 = vld [vmem:[%s3] sm:$0xf]
        %v591 = vld [vmem:[%s3 + $0x4] sm:$0xf]
        %v592 = vld [vmem:[%s6] sm:$0xff]
        %v593 = vld [vmem:[%s6 + $0x8] sm:$0xff]
        %595 = vset.pattern.permute.xlu0 0
        %596 = vperm.xlu0 %595, %v592
        %v597 = vpop.permute.xlu0 %596
        %600 = vset.pattern.permute.xlu0 0
        %601 = vperm.xlu0 %600, %v593
        %v602 = vpop.permute.xlu0 %601
        %v606 = vunpack.c.l.b16 %v590
        %v607 = vunpack.c.l.b16 %v591
        %v608 = vpack.c.b16 %v607, %v606
        %vm609 = vcmask 916480
        %v611 = vsel %vm609, %v608, 0
        %613 = vmatprep.subr.bf16.mxu0 0
        %614 = vmatpush1.bf16.msra.mxu0 %v548
        %615 = vmatprep.subr.bf16.mxu0 0
        %616 = vmatpush1.bf16.msra.mxu0 %v556
        %617 = vmatprep.subr.bf16.mxu0 0
        %618 = vmatpush1.bf16.msra.mxu0 %v562
        %619 = vmatprep.subr.bf16.mxu0 0
        %620 = vmatpush1.bf16.msra.mxu0 %v568
        %621 = vmatprep.subr.bf16.mxu0 0
        %622 = vmatpush1.bf16.msra.mxu0 %v574
        %623 = vmatprep.subr.bf16.mxu0 0
        %624 = vmatpush1.bf16.msra.mxu0 %v581
        %625 = vmatprep.subr.bf16.mxu0 0
        %626 = vmatpush1.bf16.msra.mxu0 %v588
        %627 = vmatprep.subr.bf16.mxu0 0
        %628 = vmatpush1.bf16.msra.mxu0 0
        %629 = vmatprep.subr.bf16.mxu0 0
        %630 = vmatpush1.bf16.msra.mxu0 0
        %631 = vmatprep.subr.bf16.mxu0 0
        %632 = vmatpush1.bf16.msra.mxu0 0
        %633 = vmatprep.subr.bf16.mxu0 0
        %634 = vmatpush1.bf16.msra.mxu0 0
        %635 = vmatprep.subr.bf16.mxu0 0
        %636 = vmatpush1.bf16.msra.mxu0 0
        %637 = vmatprep.subr.bf16.mxu0 0
        %638 = vmatpush1.bf16.msra.mxu0 0
        %639 = vmatprep.subr.bf16.mxu0 0
        %640 = vmatpush1.bf16.msra.mxu0 0
        %641 = vmatprep.subr.bf16.mxu0 0
        %642 = vmatpush1.bf16.msra.mxu0 0
        %643 = vmatprep.subr.bf16.mxu0 0
        %644 = vmatpush1.bf16.msra.mxu0 0
        %645 = vmatprep.mubr.bf16.mxu0 0
        %646 = vmatmul.mubr.bf16.gmra.mrb[0].mxu0 %v611
        %v647 = vpop.f32.mrb[0].mxu0
        %v648 = vadd.f32 %v597, %v647
        %v649 = vpop.f32.mrb[0].mxu0
        %v650 = vpop.f32.mrb[0].mxu0
        %v651 = vadd.f32 %v602, %v650
        %v652 = vpop.f32.mrb[0].mxu0
        %653 = vdwg.mxu0
        %654 = vst [vmem:[%s295] sm:$0xff] %v648
        %655 = vst [vmem:[%s295 + $0x8] sm:$0xff] %v651
        %s656 = sand.u32 %s197, 1
        %s657 = scalar_lea.sflag [#allocation3], %s656
        %s658 = sand.u32 %s197, 1
        %s659 = smul.addr %s658, 16
        %s660 = scalar_lea.vmem [#allocation2], %s659
        // Predicated region
        $region49: #{tpu_custom_call.1} parent=47 // pred_check
          %p661 = pneg %p207
        $region50: #{tpu_custom_call.1} parent=47 // pred_check_branch
          %663 = sbr.rel (%p661) target = $region52
        $region51: #{tpu_custom_call.1} parent=47 // pred_region
          %s665 = ssub.s32 256, 256
          %666 = vsyncadd %s657, %s665
          %s667 = smul.addr %s25, 2
          %s668 = sadd.s32 %s26, %s667
          %s669 = smul.addr %s668, 128
          %s670 = scalar_lea.hbm %s7, %s669
          %s671 = sshll.u32 %s660, 4
          %s672 = int_to_ptr.vmem [resolvable:$true] %s671
          %677 = dma.vmem_to_hbm [thread:$0]  %s672, 256, %s670, %s657, 128, 128, 8
        $region52: #{tpu_custom_call.1} parent=47 // pred_fallthru
          _
      $region48: #{tpu_custom_call.1} parent=5 // pred_fallthru
        _
      %p678 = scmp.le.s32.totalorder 2, %s16
      // Predicated region
      $region53: #{tpu_custom_call.1} parent=5 // pred_check
        %p679 = pneg %p678
      $region54: #{tpu_custom_call.1} parent=5 // pred_check_branch
        %681 = sbr.rel (%p679) target = $region56
      $region55: #{tpu_custom_call.1} parent=5 // pred_region
        %s682 = ssub.s32 %s16, 2
        // Predicated region
        $region57: #{tpu_custom_call.1} parent=55 // pred_check
          %p683 = pneg %p213
        $region58: #{tpu_custom_call.1} parent=55 // pred_check_branch
          %685 = sbr.rel (%p683) target = $region60
        $region59: #{tpu_custom_call.1} parent=55 // pred_region
          %s686 = sand.u32 %s198, 1
          %s687 = scalar_lea.sflag [#allocation3], %s686
          %s688 = sand.u32 %s198, 1
          %s689 = smul.addr %s688, 16
          %s690 = scalar_lea.vmem [#allocation2], %s689
          %691 = dma.done %s687, 256
        $region60: #{tpu_custom_call.1} parent=55 // pred_fallthru
          _
      $region56: #{tpu_custom_call.1} parent=5 // pred_fallthru
        _
    $region6: #{tpu_custom_call.1} parent=1 // loop_footer
      %s20 = sadd.s32 1, %s16
    $region7: #{tpu_custom_call.1} parent=1 // loop_footer_branch
      %15 = sbr.rel target = $region3
    $region8: #{tpu_custom_call.1} parent=1 // loop_exit
      _
    %692 = vsyncpa [#allocation3], 1
    %s693 = scalar_lea.sflag [#allocation3], 1
    %694 = vsyncpa %s693, 1

</llo_original>
